<compile_context>
chip_gen: v5e
topology: v5e:2x2
jax: 0.10.0
libtpu: 0.0.40
codegen_flags: <defaults>
</compile_context>

<pallas_src>
import functools

import jax
import jax.numpy as jnp
from jax.experimental import pallas as pl
from jax.experimental.pallas import tpu as pltpu


def _span_ce_kernel(start_ref, end_ref, labels_ref, out_ref, *, batch, block_b):
    """One batch tile: partial sum of (picked_start + 0.5*picked_end)."""
    labels = labels_ref[...]                       # (TB, 2) int32

    def head_picked(x_ref, lab_col):
        # Upcast inside the head so only one (TB, S) f32 tile is live at a time.
        x = x_ref[...].astype(jnp.float32)         # (TB, S)
        tb, seq = x.shape
        cls = jax.lax.broadcasted_iota(jnp.int32, (tb, seq), 1)
        # Label pick and row max are independent -> scheduler can co-issue
        # the VPU compare/select with the XLU reductions in one sweep.
        x_lab = jnp.sum(jnp.where(cls == lab_col, x, 0.0), axis=1, keepdims=True)
        m = jnp.max(x, axis=1, keepdims=True)      # (TB, 1)
        e = jnp.exp(x - m)                         # single EUP pass
        s = jnp.sum(e, axis=1, keepdims=True)      # (TB, 1)
        log_s = jnp.log(s)
        lse1 = m + log_s                           # logsumexp(x)
        lse2 = (m - lse1) + log_s                  # logsumexp(log_softmax(x))
        return x_lab - lse1 - lse2                 # ls2[b, lab[b]]   (TB, 1)

    picked = head_picked(start_ref, labels[:, 0:1]) \
        + 0.5 * head_picked(end_ref, labels[:, 1:2])          # (TB, 1)

    if batch % block_b != 0:
        # Ragged last tile: zero out contributions from padded (OOB) rows.
        row = pl.program_id(0) * block_b + jax.lax.broadcasted_iota(
            jnp.int32, picked.shape, 0)
        picked = jnp.where(row < batch, picked, 0.0)

    # Per-block partial: sum_b (picked_start + 0.5*picked_end).
    # Final loss = -(sum over all blocks) / B, done in the wrapper.
    partial = jnp.sum(picked, axis=0, keepdims=True)           # (1, 1)
    out_ref[...] = jnp.broadcast_to(partial, out_ref.shape)    # (1, 8, 128) vreg store


def _pick_block_b(B, S, in_bytes):
    """Batch-tile size from an explicit VMEM budget (S- and dtype-aware).

    Per batch row in one grid step:
      2 input streams x 2 pipeline buffers x S x in_bytes   (DMA'd logits)
    + ~3 x S x 4 bytes                                      (f32 temporaries)
    The 12 MiB budget stays under v5e's 16 MiB default scoped VMEM (the
    smallest of v5e/v6e/v7x), so no vmem_limit_bytes override is required.
    """
    per_row = 4 * S * in_bytes + 3 * S * 4
    budget = 12 << 20
    tb = int(max(8, min(1024, (budget // per_row) // 8 * 8)))
    if B <= 8:
        return B          # one tiny tile; block dim equals the full array dim
    # Cap at ~B/2 (multiple of 8) so the grid has >= 2 steps: shards across
    # v7x's two TensorCores and keeps DMA/compute overlap on v5e/v6e.
    half = ((B + 1) // 2 + 7) // 8 * 8
    return int(min(tb, half))


def cross_entropy_pallas(logits_start, logits_end, labels, *, block_b=None):
    B, S = logits_start.shape
    in_bytes = jnp.dtype(logits_start.dtype).itemsize
    tb = _pick_block_b(B, S, in_bytes) if block_b is None else block_b
    nb = pl.cdiv(B, tb)

    kernel = functools.partial(_span_ce_kernel, batch=B, block_b=tb)

    cost = pl.CostEstimate(
        flops=10 * B * S,
        transcendentals=2 * B * S,
        bytes_accessed=2 * B * S * in_bytes + B * 2 * 4 + nb * 8 * 128 * 4,
    )

    partials = pl.pallas_call(
        kernel,
        out_shape=jax.ShapeDtypeStruct((nb, 8, 128), jnp.float32),
        grid=(nb,),
        in_specs=[
            pl.BlockSpec((tb, S), lambda i: (i, 0)),   # start logits tile
            pl.BlockSpec((tb, S), lambda i: (i, 0)),   # end logits tile
            pl.BlockSpec((tb, 2), lambda i: (i, 0)),   # labels tile (tiny)
        ],
        out_specs=pl.BlockSpec((1, 8, 128), lambda i: (i, 0, 0)),
        compiler_params=pltpu.CompilerParams(
            # Independent batch tiles: lets v7x's two TensorCores split the
            # grid; harmless on single-TC v5e/v6e.
            dimension_semantics=("parallel",),
        ),
        cost_estimate=cost,
    )(logits_start, logits_end, labels.astype(jnp.int32))

    # Tiny O(nb) epilogue: mean over batch + head combine sign.
    return -jnp.sum(partials[:, 0, 0]) / jnp.float32(B)


def cross_entropy_ref(logits_start, logits_end, labels):
    """Pure-JAX reference mirroring the PyTorch forward exactly."""
    def head_loss(x, lab):
        ls1 = jax.nn.log_softmax(x, axis=1)
        ls2 = jax.nn.log_softmax(ls1, axis=1)   # cross_entropy re-applies log_softmax
        picked = jnp.take_along_axis(ls2, lab[:, None], axis=1)[:, 0]
        return -jnp.mean(picked)

    loss_start = head_loss(logits_start, labels[:, 0])
    loss_end = head_loss(logits_end, labels[:, 1])
    return loss_start + loss_end / 2.0


if __name__ == "__main__":
    key = jax.random.PRNGKey(0)

    # --- Test 1: small f32 problem (single tile, B <= 8) --------------------
    B, S = 8, 128
    k1, k2, k3, k4 = jax.random.split(key, 4)
    logits_start = jax.random.normal(k1, (B, S), dtype=jnp.float32)
    logits_end = jax.random.normal(k2, (B, S), dtype=jnp.float32)
    start_pos = jax.random.randint(k3, (B,), 0, S, dtype=jnp.int32)
    end_pos = jax.random.randint(k4, (B,), 0, S, dtype=jnp.int32)
    labels = jnp.stack([start_pos, end_pos], axis=1)  # (B, 2)

    loss = cross_entropy_pallas(logits_start, logits_end, labels)
    jax.block_until_ready(loss)
    ref = cross_entropy_ref(logits_start, logits_end, labels)
    assert jnp.allclose(loss, ref, rtol=1e-5, atol=1e-5), (loss, ref)

    # --- Test 2: bf16 inputs go straight into the kernel (no wrapper cast) --
    ls_bf16 = logits_start.astype(jnp.bfloat16)
    le_bf16 = logits_end.astype(jnp.bfloat16)
    loss_bf16 = cross_entropy_pallas(ls_bf16, le_bf16, labels)
    jax.block_until_ready(loss_bf16)
    ref_bf16 = cross_entropy_ref(ls_bf16.astype(jnp.float32),
                                 le_bf16.astype(jnp.float32), labels)
    assert jnp.allclose(loss_bf16, ref_bf16, rtol=1e-4, atol=1e-4), (loss_bf16, ref_bf16)

    # --- Test 3: multi-block tiled path (nb = 2, parallel batch axis) --------
    B2, S2 = 16, 256
    j1, j2, j3, j4 = jax.random.split(jax.random.PRNGKey(1), 4)
    ls2_ = jax.random.normal(j1, (B2, S2), dtype=jnp.float32)
    le2_ = jax.random.normal(j2, (B2, S2), dtype=jnp.float32)
    lab2 = jnp.stack([jax.random.randint(j3, (B2,), 0, S2, dtype=jnp.int32),
                      jax.random.randint(j4, (B2,), 0, S2, dtype=jnp.int32)], axis=1)
    loss2 = cross_entropy_pallas(ls2_, le2_, lab2)   # auto picker -> tb=8, nb=2
    jax.block_until_ready(loss2)
    ref2 = cross_entropy_ref(ls2_, le2_, lab2)
    assert jnp.allclose(loss2, ref2, rtol=1e-5, atol=1e-5), (loss2, ref2)

    # --- Test 4: ragged batch (B=12, tb=8 -> masked last tile) ---------------
    B3, S3 = 12, 128
    m1, m2, m3, m4 = jax.random.split(jax.random.PRNGKey(2), 4)
    ls3_ = jax.random.normal(m1, (B3, S3), dtype=jnp.float32)
    le3_ = jax.random.normal(m2, (B3, S3), dtype=jnp.float32)
    lab3 = jnp.stack([jax.random.randint(m3, (B3,), 0, S3, dtype=jnp.int32),
                      jax.random.randint(m4, (B3,), 0, S3, dtype=jnp.int32)], axis=1)
    loss3 = cross_entropy_pallas(ls3_, le3_, lab3)   # auto picker -> tb=8, ragged
    jax.block_until_ready(loss3)
    ref3 = cross_entropy_ref(ls3_, le3_, lab3)
    assert jnp.allclose(loss3, ref3, rtol=1e-5, atol=1e-5), (loss3, ref3)

    print("KERNEL_OK")
</pallas_src>

<mosaic_0001>
module attributes {stable_mosaic.version = 11 : i64} {
  func.func @_span_ce_kernel(%arg0: i32, %arg1: memref<8x128xf32, #tpu.memory_space<vmem>>, %arg2: memref<8x128xf32, #tpu.memory_space<vmem>>, %arg3: memref<8x2xi32, #tpu.memory_space<vmem>>, %arg4: memref<1x8x128xf32, #tpu.memory_space<vmem>>) attributes {dimension_semantics = [#tpu.dimension_semantics<parallel>], iteration_bounds = array<i64: 1>, scalar_prefetch = 0 : i64, scratch_operands = 0 : i64, tpu.core_type = #tpu.core_type<tc>, window_params = [{transform_indices = @transform_0, window_bounds = array<i64: 8, 128>}, {transform_indices = @transform_1, window_bounds = array<i64: 8, 128>}, {transform_indices = @transform_2, window_bounds = array<i64: 8, 2>}, {transform_indices = @transform_3, window_bounds = array<i64: 1, 8, 128>}]} {
    %c0 = arith.constant 0 : index
    %c0_0 = arith.constant 0 : index
    %0 = vector.load %arg3[%c0, %c0_0] : memref<8x2xi32, #tpu.memory_space<vmem>>, vector<8x2xi32>
    %1 = vector.extract_strided_slice %0 {offsets = [0, 0], sizes = [8, 1], strides = [1, 1]} : vector<8x2xi32> to vector<8x1xi32>
    %c0_1 = arith.constant 0 : index
    %c0_2 = arith.constant 0 : index
    %2 = vector.load %arg1[%c0_1, %c0_2] : memref<8x128xf32, #tpu.memory_space<vmem>>, vector<8x128xf32>
    %3 = tpu.iota {dimensions = array<i32: 1>} : vector<8x128xi32>
    %4 = vector.broadcast %1 : vector<8x1xi32> to vector<8x128xi32>
    %5 = arith.cmpi eq, %3, %4 : vector<8x128xi32>
    %cst = arith.constant 0.000000e+00 : f32
    %6 = vector.broadcast %cst : f32 to vector<8x128xf32>
    %7 = arith.select %5, %2, %6 : vector<8x128xi1>, vector<8x128xf32>
    %cst_3 = arith.constant dense<0.000000e+00> : vector<8xf32>
    %8 = vector.multi_reduction <add>, %7, %cst_3 [1] : vector<8x128xf32> to vector<8xf32>
    %9 = vector.shape_cast %8 : vector<8xf32> to vector<8x1xf32>
    %cst_4 = arith.constant dense<0xFF800000> : vector<8xf32>
    %10 = vector.multi_reduction <maximumf>, %2, %cst_4 [1] : vector<8x128xf32> to vector<8xf32>
    %11 = vector.shape_cast %10 : vector<8xf32> to vector<8x1xf32>
    %12 = vector.broadcast %11 : vector<8x1xf32> to vector<8x128xf32>
    %13 = arith.subf %2, %12 : vector<8x128xf32>
    %14 = math.exp %13 : vector<8x128xf32>
    %cst_5 = arith.constant dense<0.000000e+00> : vector<8xf32>
    %15 = vector.multi_reduction <add>, %14, %cst_5 [1] : vector<8x128xf32> to vector<8xf32>
    %16 = vector.shape_cast %15 : vector<8xf32> to vector<8x1xf32>
    %17 = math.log %16 : vector<8x1xf32>
    %18 = arith.addf %11, %17 : vector<8x1xf32>
    %19 = arith.subf %11, %18 : vector<8x1xf32>
    %20 = arith.addf %19, %17 : vector<8x1xf32>
    %21 = arith.subf %9, %18 : vector<8x1xf32>
    %22 = arith.subf %21, %20 : vector<8x1xf32>
    %23 = vector.extract_strided_slice %0 {offsets = [0, 1], sizes = [8, 1], strides = [1, 1]} : vector<8x2xi32> to vector<8x1xi32>
    %c0_6 = arith.constant 0 : index
    %c0_7 = arith.constant 0 : index
    %24 = vector.load %arg2[%c0_6, %c0_7] : memref<8x128xf32, #tpu.memory_space<vmem>>, vector<8x128xf32>
    %25 = tpu.iota {dimensions = array<i32: 1>} : vector<8x128xi32>
    %26 = vector.broadcast %23 : vector<8x1xi32> to vector<8x128xi32>
    %27 = arith.cmpi eq, %25, %26 : vector<8x128xi32>
    %cst_8 = arith.constant 0.000000e+00 : f32
    %28 = vector.broadcast %cst_8 : f32 to vector<8x128xf32>
    %29 = arith.select %27, %24, %28 : vector<8x128xi1>, vector<8x128xf32>
    %cst_9 = arith.constant dense<0.000000e+00> : vector<8xf32>
    %30 = vector.multi_reduction <add>, %29, %cst_9 [1] : vector<8x128xf32> to vector<8xf32>
    %31 = vector.shape_cast %30 : vector<8xf32> to vector<8x1xf32>
    %cst_10 = arith.constant dense<0xFF800000> : vector<8xf32>
    %32 = vector.multi_reduction <maximumf>, %24, %cst_10 [1] : vector<8x128xf32> to vector<8xf32>
    %33 = vector.shape_cast %32 : vector<8xf32> to vector<8x1xf32>
    %34 = vector.broadcast %33 : vector<8x1xf32> to vector<8x128xf32>
    %35 = arith.subf %24, %34 : vector<8x128xf32>
    %36 = math.exp %35 : vector<8x128xf32>
    %cst_11 = arith.constant dense<0.000000e+00> : vector<8xf32>
    %37 = vector.multi_reduction <add>, %36, %cst_11 [1] : vector<8x128xf32> to vector<8xf32>
    %38 = vector.shape_cast %37 : vector<8xf32> to vector<8x1xf32>
    %39 = math.log %38 : vector<8x1xf32>
    %40 = arith.addf %33, %39 : vector<8x1xf32>
    %41 = arith.subf %33, %40 : vector<8x1xf32>
    %42 = arith.addf %41, %39 : vector<8x1xf32>
    %43 = arith.subf %31, %40 : vector<8x1xf32>
    %44 = arith.subf %43, %42 : vector<8x1xf32>
    %cst_12 = arith.constant 5.000000e-01 : f32
    %45 = vector.broadcast %cst_12 : f32 to vector<8x1xf32>
    %46 = arith.mulf %45, %44 : vector<8x1xf32>
    %47 = arith.addf %22, %46 : vector<8x1xf32>
    %cst_13 = arith.constant dense<0.000000e+00> : vector<1xf32>
    %48 = vector.multi_reduction <add>, %47, %cst_13 [0] : vector<8x1xf32> to vector<1xf32>
    %49 = vector.shape_cast %48 : vector<1xf32> to vector<1x1xf32>
    %50 = vector.shape_cast %49 : vector<1x1xf32> to vector<1x1x1xf32>
    %51 = vector.broadcast %50 : vector<1x1x1xf32> to vector<1x8x128xf32>
    %c0_14 = arith.constant 0 : index
    %c0_15 = arith.constant 0 : index
    %c0_16 = arith.constant 0 : index
    %52 = vector.load %arg4[%c0_14, %c0_15, %c0_16] : memref<1x8x128xf32, #tpu.memory_space<vmem>>, vector<1x8x128xf32>
    tpu.vector_store %arg4[%c0_14, %c0_15, %c0_16], %51 {strides = array<i32>} : memref<1x8x128xf32, #tpu.memory_space<vmem>>, vector<1x8x128xf32>,
    return
  }
  func.func @transform_0(%arg0: i32) -> (i32, i32) {
    %c0_i32 = arith.constant 0 : i32
    %c0_i32_0 = arith.constant 0 : i32
    return %arg0, %c0_i32 : i32, i32
  }
  func.func @transform_1(%arg0: i32) -> (i32, i32) {
    %c0_i32 = arith.constant 0 : i32
    %c0_i32_0 = arith.constant 0 : i32
    return %arg0, %c0_i32 : i32, i32
  }
  func.func @transform_2(%arg0: i32) -> (i32, i32) {
    %c0_i32 = arith.constant 0 : i32
    %c0_i32_0 = arith.constant 0 : i32
    return %arg0, %c0_i32 : i32, i32
  }
  func.func @transform_3(%arg0: i32) -> (i32, i32, i32) {
    %c0_i32 = arith.constant 0 : i32
    %c0_i32_0 = arith.constant 0 : i32
    %c0_i32_1 = arith.constant 0 : i32
    return %arg0, %c0_i32, %c0_i32_0 : i32, i32, i32
  }
}

</mosaic_0001>

<llo_original>
// kernel: tpu_custom_call.1
$region0: #{tpu_custom_call.1}
  #allocation0 [shape = 'u32[]', space=smem, size = 0x4, offset = 0x4, fixed_abs, tag = 'smem constant byte address 0x4 - core index']
  #allocation1 [shape = 'u32[72,128]{1,0:T(1,128)}', space=vmem, size = 0x9000, scoped, tag = 'internal scratch']
  %s0 = inlined_call_operand.vmem [shape: f32[8,128], index: 0, kind: input, shape index: {}]
  %s1 = inlined_call_operand.hbm [shape: f32[8,128], index: 1, kind: input, shape index: {}]
  %s2 = inlined_call_operand.vmem [shape: s32[8,2], index: 2, kind: input, shape index: {}]
  %s3 = inlined_call_operand.hbm [shape: f32[1,8,128], index: 3, kind: output, shape index: {}]
  %s4 = sld [smem:[#allocation0]]
  $region26: #{tpu_custom_call.1} parent=0
    _
  %s6 = ssub.s32 1, %s4
  %s7 = scalar_select 0, %s6, %s4
  $region1: #{tpu_custom_call.1} parent=0
    #allocation2 [shape = 'u8[4096]{0}', space=vmem, size = 0x1000, scoped, tag = 'input window, operand 1, single buffered']
    #allocation3 [shape = 's32[1]{0}', space=sflag, size = 0x4, scoped, tag = 'scoped memory for tpu_custom_call.1']
    #allocation4 [shape = 's32[1]{0}', space=sflag, size = 0x4, scoped, tag = 'scoped memory for tpu_custom_call.1']
    #allocation5 [shape = 'u8[4096]{0}', space=vmem, size = 0x1000, scoped, tag = 'output window, operand 0, single buffered']
    %8 = vsyncpa [#allocation3], 0
    %9 = vsyncpa [#allocation4], 0
    // Predicated region
    $region2: #{tpu_custom_call.1} parent=1 // pred_check
      _
    $region3: #{tpu_custom_call.1} parent=1 // pred_check_branch
      %11 = sbr.rel (0) target = $region5
    $region4: #{tpu_custom_call.1} parent=1 // pred_region
      _
    $region5: #{tpu_custom_call.1} parent=1 // pred_fallthru
      _
    // Predicated region
    $region6: #{tpu_custom_call.1} parent=1 // pred_check
      _
    $region7: #{tpu_custom_call.1} parent=1 // pred_check_branch
      %13 = sbr.rel (0) target = $region9
    $region8: #{tpu_custom_call.1} parent=1 // pred_region
      %15 = vsyncadd [#allocation3], 0
      %s17 = sshll.u32 %s1, 4
      %s18 = int_to_ptr.hbm [resolvable:$true] %s17
      %s19 = sshll.u32 [#allocation2], 4
      %s20 = int_to_ptr.vmem [resolvable:$true] %s19
      %22 = dma.hbm_to_vmem [thread:$0]  %s18, 128, %s20, [#allocation3]
    $region9: #{tpu_custom_call.1} parent=1 // pred_fallthru
      _
    // Predicated region
    $region10: #{tpu_custom_call.1} parent=1 // pred_check
      _
    $region11: #{tpu_custom_call.1} parent=1 // pred_check_branch
      %24 = sbr.rel (0) target = $region13
    $region12: #{tpu_custom_call.1} parent=1 // pred_region
      _
    $region13: #{tpu_custom_call.1} parent=1 // pred_fallthru
      _
    // Predicated region
    $region14: #{tpu_custom_call.1} parent=1 // pred_check
      _
    $region15: #{tpu_custom_call.1} parent=1 // pred_check_branch
      %26 = sbr.rel (0) target = $region17
    $region16: #{tpu_custom_call.1} parent=1 // pred_region
      %28 = dma.done [#allocation3], 128
    $region17: #{tpu_custom_call.1} parent=1 // pred_fallthru
      _
    %v29 = vld [vmem:[%s2] sm:$0xff]
    %v30 = vld [vmem:[%s0] sm:$0xff]
    %v31 = vlaneseq
    %v32 = vand.u32 %v31, 127
    %33 = vset.pattern.permute.xlu0 0
    %34 = vperm.xlu0 %33, %v29
    %v35 = vpop.permute.xlu0 %34
    %vm36 = vcmp.eq.s32.totalorder %v32, %v35
    %v37 = vsel %vm36, %v30, 0.0
    %38 = vadd.xlane.f32.xlu0 %v37
    %v39 = vpop.xlane.xlu0 %38
    %40 = vmax.xlane.f32.xlu0 %v30
    %v41 = vpop.xlane.xlu0 %40
    %v42 = vsub.f32 %v30, %v41
    %v43 = vmul.f32 %v42, 1.442695
    %v44 = vpow.pop %v43
    %45 = vadd.xlane.f32.xlu0 %v44
    %v46 = vpop.xlane.xlu0 %45
    %v47 = vlog2.pop %v46
    %v48 = vmul.f32 %v47, 0.6931472
    %v49 = vadd.f32 %v41, %v48
    %v50 = vsub.f32 %v41, %v49
    %v51 = vadd.f32 %v50, %v48
    %v52 = vsub.f32 %v39, %v49
    %v53 = vsub.f32 %v52, %v51
    %v54 = vld [vmem:[#allocation2] sm:$0xff]
    %55 = vset.pattern.permute.xlu0 1
    %56 = vperm.xlu0 %55, %v29
    %v57 = vpop.permute.xlu0 %56
    %vm58 = vcmp.eq.s32.totalorder %v32, %v57
    %v59 = vsel %vm58, %v54, 0.0
    %60 = vadd.xlane.f32.xlu0 %v59
    %v61 = vpop.xlane.xlu0 %60
    %62 = vmax.xlane.f32.xlu0 %v54
    %v63 = vpop.xlane.xlu0 %62
    %v64 = vsub.f32 %v54, %v63
    %v65 = vmul.f32 %v64, 1.442695
    %v66 = vpow.pop %v65
    %67 = vadd.xlane.f32.xlu0 %v66
    %v68 = vpop.xlane.xlu0 %67
    %v69 = vlog2.pop %v68
    %v70 = vmul.f32 %v69, 0.6931472
    %v71 = vadd.f32 %v63, %v70
    %v72 = vsub.f32 %v63, %v71
    %v73 = vadd.f32 %v72, %v70
    %v74 = vsub.f32 %v61, %v71
    %v75 = vsub.f32 %v74, %v73
    %v76 = vmul.f32 %v75, 0.5
    %v77 = vadd.f32 %v53, %v76
    %v78 = vrot.slane %v77, 4
    %v79 = vadd.f32 %v77, %v78
    %v80 = vrot.slane %v79, 2
    %v81 = vadd.f32 %v79, %v80
    %v82 = vrot.slane %v81, 1
    %v83 = vadd.f32 %v81, %v82
    %84 = vst [vmem:[#allocation5] sm:$0xff] %v83
    // Predicated region
    $region18: #{tpu_custom_call.1} parent=1 // pred_check
      _
    $region19: #{tpu_custom_call.1} parent=1 // pred_check_branch
      %86 = sbr.rel (0) target = $region21
    $region20: #{tpu_custom_call.1} parent=1 // pred_region
      %88 = vsyncadd [#allocation4], 0
      %s90 = sshll.u32 [#allocation5], 4
      %s91 = int_to_ptr.vmem [resolvable:$true] %s90
      %s92 = sshll.u32 %s3, 4
      %s93 = int_to_ptr.hbm [resolvable:$true] %s92
      %95 = dma.vmem_to_hbm [thread:$0]  %s91, 128, %s93, [#allocation4]
    $region21: #{tpu_custom_call.1} parent=1 // pred_fallthru
      _
    // Predicated region
    $region22: #{tpu_custom_call.1} parent=1 // pred_check
      _
    $region23: #{tpu_custom_call.1} parent=1 // pred_check_branch
      %97 = sbr.rel (0) target = $region25
    $region24: #{tpu_custom_call.1} parent=1 // pred_region
      %99 = dma.done [#allocation4], 128
    $region25: #{tpu_custom_call.1} parent=1 // pred_fallthru
      _
    %100 = vsyncpa [#allocation3], 1
    %101 = vsyncpa [#allocation4], 1

</llo_original>
